<compile_context>
chip_gen: v7x
topology: tpu7x:2x2x1
jax: 0.10.0
libtpu: 0.0.40
codegen_flags: <defaults>
</compile_context>

<pallas_src>
import numpy as np
import jax
import jax.numpy as jnp
from jax.experimental import pallas as pl
from jax.experimental.pallas import tpu as pltpu

IN_H, IN_W = 210, 160        # hard-coded by the PyTorch module's view([1,1,210,160])
RGB2Y = (0.299, 0.587, 0.114)


def _bilinear_weight_matrix(in_size: int, out_size: int) -> np.ndarray:
    """Interpolation matrix W (out_size, in_size) reproducing
    torch.nn.functional.interpolate(mode='bilinear', align_corners=False)."""
    scale = in_size / out_size
    dst = np.arange(out_size, dtype=np.float64)
    src = (dst + 0.5) * scale - 0.5
    src = np.maximum(src, 0.0)                       # PyTorch clamps negatives to 0
    i0 = np.minimum(np.floor(src).astype(np.int64), in_size - 1)
    i1 = np.minimum(i0 + 1, in_size - 1)
    frac = np.clip(src - i0, 0.0, 1.0)
    w = np.zeros((out_size, in_size), dtype=np.float32)
    w[np.arange(out_size), i0] += (1.0 - frac).astype(np.float32)
    w[np.arange(out_size), i1] += frac.astype(np.float32)
    return w


def _scale_kernel(x_ref, wh_ref, ww_ref, o_ref):
    # x_ref : (210, 480)  f32  HWC frame viewed as 2D (last axis = W*3)
    # wh_ref: (84, 210)   bf16 height-interpolation matrix
    # ww_ref: (480, 84)   bf16 rgb2y folded into width interpolation
    # o_ref : (84, 84)    f32
    x_bf = x_ref[...].astype(jnp.bfloat16)
    tmp = jnp.dot(x_bf, ww_ref[...], preferred_element_type=jnp.float32)      # (210, 84)
    o_ref[...] = jnp.dot(wh_ref[...], tmp.astype(jnp.bfloat16),
                         preferred_element_type=jnp.float32)                  # (84, 84)


class Scale:
    """JAX/Pallas equivalent of the PyTorch Scale(height, width) module."""

    def __init__(self, height: int, width: int):
        self.height = height
        self.width = width
        # F.interpolate(size=(self.width, self.height)) -> out spatial = (width, height)
        out_h, out_w = width, height
        # The PyTorch module hard-codes view([1, 84, 84]); anything else would
        # silently scramble axes, so require it.
        assert out_h == 84 and out_w == 84, "module reshapes to (1, 84, 84)"
        self._out_h, self._out_w = out_h, out_w

        # Height interpolation matrix (out_h, 210).
        wh = _bilinear_weight_matrix(IN_H, out_h)
        # Width interpolation matrix with rgb2y folded in:
        #   ww_rgb[w*3 + c, j] = RGB2Y[c] * Ww[j, w]
        ww = _bilinear_weight_matrix(IN_W, out_w)                     # (out_w, 160)
        rgb = np.asarray(RGB2Y, dtype=np.float32)
        ww_rgb = np.einsum("wj,c->wcj", ww.T.astype(np.float32),
                           rgb).reshape(IN_W * 3, out_w)              # (480, out_w)

        # bf16 weights: halves weight HBM bytes, native MXU operand dtype.
        self._wh = jnp.asarray(wh, dtype=jnp.bfloat16)                # (84, 210)
        self._ww_rgb = jnp.asarray(ww_rgb, dtype=jnp.bfloat16)        # (480, 84)

        # Advisory cost model (single frame).
        self._flops_per_frame = 2 * (IN_H * IN_W * 3 * out_w + out_h * IN_H * out_w)
        self._bytes_frame_io = IN_H * IN_W * 3 * 4 + out_h * out_w * 4
        self._bytes_weights = self._wh.size * 2 + self._ww_rgb.size * 2

    # ----- single-frame path (matches the nn.Module forward) ----------------
    def _pallas_forward(self, x2d):
        return pl.pallas_call(
            _scale_kernel,
            out_shape=jax.ShapeDtypeStruct((self._out_h, self._out_w), jnp.float32),
            in_specs=[
                pl.BlockSpec(memory_space=pltpu.MemorySpace.VMEM),
                pl.BlockSpec(memory_space=pltpu.MemorySpace.VMEM),
                pl.BlockSpec(memory_space=pltpu.MemorySpace.VMEM),
            ],
            out_specs=pl.BlockSpec(memory_space=pltpu.MemorySpace.VMEM),
            cost_estimate=pl.CostEstimate(
                flops=self._flops_per_frame,
                transcendentals=0,
                bytes_accessed=self._bytes_frame_io + self._bytes_weights),
        )(x2d, self._wh, self._ww_rgb)

    def __call__(self, x):
        if x.ndim > 3:
            print('Scale: WARNING: `x.ndim > 3`')
            x = x[0]
        assert x.dtype == jnp.float32
        assert x.shape == (IN_H, IN_W, 3)
        # Free contiguous view of the HWC frame: (210, 160*3) — no transpose.
        x2d = jnp.reshape(x, (IN_H, IN_W * 3))
        out = self._pallas_forward(x2d)                 # (84, 84)
        return out.reshape(1, 84, 84)

    # ----- batched path: amortizes launch + weight DMA; v7x megacore --------
    def forward_batch(self, xb):
        """xb: (B, 210, 160, 3) float32 -> (B, 1, 84, 84) float32."""
        assert xb.dtype == jnp.float32 and xb.shape[1:] == (IN_H, IN_W, 3)
        B = xb.shape[0]
        x3d = jnp.reshape(xb, (B, IN_H, IN_W * 3))
        out = pl.pallas_call(
            _scale_kernel,
            out_shape=jax.ShapeDtypeStruct((B, self._out_h, self._out_w), jnp.float32),
            grid=(B,),
            in_specs=[
                pl.BlockSpec((None, IN_H, IN_W * 3), lambda b: (b, 0, 0)),
                pl.BlockSpec((self._out_h, IN_H), lambda b: (0, 0)),      # resident
                pl.BlockSpec((IN_W * 3, self._out_w), lambda b: (0, 0)),  # resident
            ],
            out_specs=pl.BlockSpec((None, self._out_h, self._out_w),
                                   lambda b: (b, 0, 0)),
            compiler_params=pltpu.CompilerParams(
                dimension_semantics=("parallel",)),
            cost_estimate=pl.CostEstimate(
                flops=B * self._flops_per_frame,
                transcendentals=0,
                bytes_accessed=B * self._bytes_frame_io + self._bytes_weights),
        )(x3d, self._wh, self._ww_rgb)
        return out.reshape(B, 1, 84, 84)


if __name__ == "__main__":
    key = jax.random.PRNGKey(0)
    # Shape fixed by the module: (210, 160, 3) float32 RGB frames.
    xb = jax.random.uniform(key, (2, IN_H, IN_W, 3), dtype=jnp.float32)
    x = xb[0]

    model = Scale(84, 84)

    # Single-frame path (matches nn.Module.forward).
    y = jax.block_until_ready(model(x))
    assert y.shape == (1, 84, 84) and y.dtype == jnp.float32

    # Batched path.
    yb = jax.block_until_ready(model.forward_batch(xb))
    assert yb.shape == (2, 1, 84, 84) and yb.dtype == jnp.float32

    # Reference: rgb2y then separable bilinear resize, computed in float64.
    wh_np = _bilinear_weight_matrix(IN_H, 84).astype(np.float64)     # (84, 210)
    ww_np = _bilinear_weight_matrix(IN_W, 84).astype(np.float64)     # (84, 160)

    def ref_frame(frame):
        luma = np.asarray(frame, dtype=np.float64) @ np.asarray(RGB2Y, np.float64)
        return (wh_np @ luma @ ww_np.T).reshape(1, 84, 84)

    # bf16 weights + bf16 MXU operands => relaxed tolerance (fine for 8-bit pixels).
    np.testing.assert_allclose(np.asarray(y), ref_frame(x), rtol=2e-2, atol=2e-2)
    for b in range(2):
        np.testing.assert_allclose(np.asarray(yb[b]), ref_frame(xb[b]),
                                   rtol=2e-2, atol=2e-2)

    print("KERNEL_OK")
</pallas_src>

<mosaic_0001>
module attributes {stable_mosaic.version = 11 : i64} {
  func.func @_scale_kernel(%arg0: memref<210x480xf32, #tpu.memory_space<vmem>>, %arg1: memref<84x210xbf16, #tpu.memory_space<vmem>>, %arg2: memref<480x84xbf16, #tpu.memory_space<vmem>>, %arg3: memref<84x84xf32, #tpu.memory_space<vmem>>) attributes {dimension_semantics = [], scalar_prefetch = 0 : i64, scratch_operands = 0 : i64, tpu.core_type = #tpu.core_type<tc>} {
    %c0 = arith.constant 0 : index
    %c0_0 = arith.constant 0 : index
    %0 = vector.load %arg0[%c0, %c0_0] : memref<210x480xf32, #tpu.memory_space<vmem>>, vector<210x480xf32>
    %1 = arith.truncf %0 : vector<210x480xf32> to vector<210x480xbf16>
    %c0_1 = arith.constant 0 : index
    %c0_2 = arith.constant 0 : index
    %2 = vector.load %arg2[%c0_1, %c0_2] : memref<480x84xbf16, #tpu.memory_space<vmem>>, vector<480x84xbf16>
    %cst = arith.constant dense<0.000000e+00> : vector<210x84xf32>
    %3 = tpu.matmul %1, %2, %cst {dimension_numbers = #tpu.dot_dimension_numbers<[1], [0], [0], [1], [0, 0, 1, 1], [], []>} : vector<210x480xbf16>, vector<480x84xbf16>, vector<210x84xf32> -> vector<210x84xf32>
    %c0_3 = arith.constant 0 : index
    %c0_4 = arith.constant 0 : index
    %4 = vector.load %arg1[%c0_3, %c0_4] : memref<84x210xbf16, #tpu.memory_space<vmem>>, vector<84x210xbf16>
    %5 = arith.truncf %3 : vector<210x84xf32> to vector<210x84xbf16>
    %cst_5 = arith.constant dense<0.000000e+00> : vector<84x84xf32>
    %6 = tpu.matmul %4, %5, %cst_5 {dimension_numbers = #tpu.dot_dimension_numbers<[1], [0], [0], [1], [0, 0, 1, 1], [], []>} : vector<84x210xbf16>, vector<210x84xbf16>, vector<84x84xf32> -> vector<84x84xf32>
    %c0_6 = arith.constant 0 : index
    %c0_7 = arith.constant 0 : index
    %7 = vector.load %arg3[%c0_6, %c0_7] : memref<84x84xf32, #tpu.memory_space<vmem>>, vector<84x84xf32>
    tpu.vector_store %arg3[%c0_6, %c0_7], %6 {strides = array<i32>} : memref<84x84xf32, #tpu.memory_space<vmem>>, vector<84x84xf32>,
    return
  }
}

</mosaic_0001>

<llo_original>
// kernel: tpu_custom_call.1
$region0: #{tpu_custom_call.1}
  #allocation0 [shape = 'u32[]', space=smem, size = 0x4, offset = 0x4, fixed_abs, tag = 'smem constant byte address 0x4 - core index']
  #allocation1 [shape = 'u32[144,128]{1,0:T(1,128)}', space=vmem, size = 0x12000, scoped, tag = 'internal scratch']
  %s0 = inlined_call_operand.hbm [shape: f32[210,480], index: 0, kind: input, shape index: {}]
  %s1 = inlined_call_operand.vmem [shape: bf16[84,210], index: 1, kind: input, shape index: {}]
  %s2 = inlined_call_operand.vmem [shape: bf16[480,84], index: 2, kind: input, shape index: {}]
  %s3 = inlined_call_operand.hbm [shape: f32[84,84], index: 3, kind: output, shape index: {}]
  %s4 = sld [smem:[#allocation0]]
  $region26: #{tpu_custom_call.1} parent=0
    _
  %s6 = ssub.s32 1, %s4
  %s7 = scalar_select 0, %s6, %s4
  $region1: #{tpu_custom_call.1} parent=0
    #allocation2 [shape = 'u8[442368]{0}', space=vmem, size = 0x6c000, scoped, tag = 'input window, operand 0, single buffered']
    #allocation3 [shape = 's32[1]{0}', space=sflag, size = 0x4, scoped, tag = 'scoped memory for tpu_custom_call.1']
    #allocation4 [shape = 's32[1]{0}', space=sflag, size = 0x4, scoped, tag = 'scoped memory for tpu_custom_call.1']
    #allocation5 [shape = 'u8[45056]{0}', space=vmem, size = 0xb000, scoped, tag = 'output window, operand 0, single buffered']
    %8 = vsyncpa [#allocation3], 0
    %9 = vsyncpa [#allocation4], 0
    // Predicated region
    $region2: #{tpu_custom_call.1} parent=1 // pred_check
      _
    $region3: #{tpu_custom_call.1} parent=1 // pred_check_branch
      %11 = sbr.rel (0) target = $region5
    $region4: #{tpu_custom_call.1} parent=1 // pred_region
      %s13 = ssub.s32 13824, 13824
      %14 = vsyncadd [#allocation3], %s13
      %s15 = sshll.u32 [#allocation2], 4
      %s16 = int_to_ptr.vmem [resolvable:$true] %s15
      %21 = dma.hbm_to_vmem [thread:$0]  %s0, 13824, %s16, [#allocation3], 512, 512, 32
    $region5: #{tpu_custom_call.1} parent=1 // pred_fallthru
      _
    // Predicated region
    $region6: #{tpu_custom_call.1} parent=1 // pred_check
      _
    $region7: #{tpu_custom_call.1} parent=1 // pred_check_branch
      %23 = sbr.rel (0) target = $region9
    $region8: #{tpu_custom_call.1} parent=1 // pred_region
      _
    $region9: #{tpu_custom_call.1} parent=1 // pred_fallthru
      _
    // Predicated region
    $region10: #{tpu_custom_call.1} parent=1 // pred_check
      _
    $region11: #{tpu_custom_call.1} parent=1 // pred_check_branch
      %25 = sbr.rel (0) target = $region13
    $region12: #{tpu_custom_call.1} parent=1 // pred_region
      _
    $region13: #{tpu_custom_call.1} parent=1 // pred_fallthru
      _
    // Predicated region
    $region14: #{tpu_custom_call.1} parent=1 // pred_check
      _
    $region15: #{tpu_custom_call.1} parent=1 // pred_check_branch
      %27 = sbr.rel (0) target = $region17
    $region16: #{tpu_custom_call.1} parent=1 // pred_region
      %28 = dma.done [#allocation3], 13824
    $region17: #{tpu_custom_call.1} parent=1 // pred_fallthru
      _
    %v30 = vld [vmem:[#allocation2] sm:$0xff]
    %v31 = vld [vmem:[#allocation2 + $0x8] sm:$0xff]
    %v32 = vld [vmem:[#allocation2 + $0x10] sm:$0xff]
    %v33 = vld [vmem:[#allocation2 + $0x18] sm:$0xff]
    %v34 = vld [vmem:[#allocation2 + $0x20] sm:$0xff]
    %v35 = vld [vmem:[#allocation2 + $0x28] sm:$0xff]
    %v36 = vld [vmem:[#allocation2 + $0x30] sm:$0xff]
    %v37 = vld [vmem:[#allocation2 + $0x38] sm:$0xff]
    %v38 = vld [vmem:[#allocation2 + $0x40] sm:$0xff]
    %v39 = vld [vmem:[#allocation2 + $0x48] sm:$0xff]
    %v40 = vld [vmem:[#allocation2 + $0x50] sm:$0xff]
    %v41 = vld [vmem:[#allocation2 + $0x58] sm:$0xff]
    %v42 = vld [vmem:[#allocation2 + $0x60] sm:$0xff]
    %v43 = vld [vmem:[#allocation2 + $0x68] sm:$0xff]
    %v44 = vld [vmem:[#allocation2 + $0x70] sm:$0xff]
    %v45 = vld [vmem:[#allocation2 + $0x78] sm:$0xff]
    %v46 = vld [vmem:[#allocation2 + $0x80] sm:$0xff]
    %v47 = vld [vmem:[#allocation2 + $0x88] sm:$0xff]
    %v48 = vld [vmem:[#allocation2 + $0x90] sm:$0xff]
    %v49 = vld [vmem:[#allocation2 + $0x98] sm:$0xff]
    %v50 = vld [vmem:[#allocation2 + $0xa0] sm:$0xff]
    %v51 = vld [vmem:[#allocation2 + $0xa8] sm:$0xff]
    %v52 = vld [vmem:[#allocation2 + $0xb0] sm:$0xff]
    %v53 = vld [vmem:[#allocation2 + $0xb8] sm:$0xff]
    %v54 = vld [vmem:[#allocation2 + $0xc0] sm:$0xff]
    %v55 = vld [vmem:[#allocation2 + $0xc8] sm:$0xff]
    %v56 = vld [vmem:[#allocation2 + $0xd0] sm:$0xff]
    %v57 = vld [vmem:[#allocation2 + $0xd8] sm:$0xff]
    %v58 = vld [vmem:[#allocation2 + $0xe0] sm:$0xff]
    %v59 = vld [vmem:[#allocation2 + $0xe8] sm:$0xff]
    %v60 = vld [vmem:[#allocation2 + $0xf0] sm:$0xff]
    %v61 = vld [vmem:[#allocation2 + $0xf8] sm:$0xff]
    %v62 = vld [vmem:[#allocation2 + $0x100] sm:$0xff]
    %v63 = vld [vmem:[#allocation2 + $0x108] sm:$0xff]
    %v64 = vld [vmem:[#allocation2 + $0x110] sm:$0xff]
    %v65 = vld [vmem:[#allocation2 + $0x118] sm:$0xff]
    %v66 = vld [vmem:[#allocation2 + $0x120] sm:$0xff]
    %v67 = vld [vmem:[#allocation2 + $0x128] sm:$0xff]
    %v68 = vld [vmem:[#allocation2 + $0x130] sm:$0xff]
    %v69 = vld [vmem:[#allocation2 + $0x138] sm:$0xff]
    %v70 = vld [vmem:[#allocation2 + $0x140] sm:$0xff]
    %v71 = vld [vmem:[#allocation2 + $0x148] sm:$0xff]
    %v72 = vld [vmem:[#allocation2 + $0x150] sm:$0xff]
    %v73 = vld [vmem:[#allocation2 + $0x158] sm:$0xff]
    %v74 = vld [vmem:[#allocation2 + $0x160] sm:$0xff]
    %v75 = vld [vmem:[#allocation2 + $0x168] sm:$0xff]
    %v76 = vld [vmem:[#allocation2 + $0x170] sm:$0xff]
    %v77 = vld [vmem:[#allocation2 + $0x178] sm:$0xff]
    %v78 = vld [vmem:[#allocation2 + $0x180] sm:$0xff]
    %v79 = vld [vmem:[#allocation2 + $0x188] sm:$0xff]
    %v80 = vld [vmem:[#allocation2 + $0x190] sm:$0xff]
    %v81 = vld [vmem:[#allocation2 + $0x198] sm:$0xff]
    %v82 = vld [vmem:[#allocation2 + $0x1a0] sm:$0xff]
    %v83 = vld [vmem:[#allocation2 + $0x1a8] sm:$0xff]
    %v84 = vld [vmem:[#allocation2 + $0x1b0] sm:$0xff]
    %v85 = vld [vmem:[#allocation2 + $0x1b8] sm:$0xff]
    %v86 = vld [vmem:[#allocation2 + $0x1c0] sm:$0xff]
    %v87 = vld [vmem:[#allocation2 + $0x1c8] sm:$0xff]
    %v88 = vld [vmem:[#allocation2 + $0x1d0] sm:$0xff]
    %v89 = vld [vmem:[#allocation2 + $0x1d8] sm:$0xff]
    %v90 = vld [vmem:[#allocation2 + $0x1e0] sm:$0xff]
    %v91 = vld [vmem:[#allocation2 + $0x1e8] sm:$0xff]
    %v92 = vld [vmem:[#allocation2 + $0x1f0] sm:$0xff]
    %v93 = vld [vmem:[#allocation2 + $0x1f8] sm:$0xff]
    %v94 = vld [vmem:[#allocation2 + $0x200] sm:$0xff]
    %v95 = vld [vmem:[#allocation2 + $0x208] sm:$0xff]
    %v96 = vld [vmem:[#allocation2 + $0x210] sm:$0xff]
    %v97 = vld [vmem:[#allocation2 + $0x218] sm:$0xff]
    %v98 = vld [vmem:[#allocation2 + $0x220] sm:$0xff]
    %v99 = vld [vmem:[#allocation2 + $0x228] sm:$0xff]
    %v100 = vld [vmem:[#allocation2 + $0x230] sm:$0xff]
    %v101 = vld [vmem:[#allocation2 + $0x238] sm:$0xff]
    %v102 = vld [vmem:[#allocation2 + $0x240] sm:$0xff]
    %v103 = vld [vmem:[#allocation2 + $0x248] sm:$0xff]
    %v104 = vld [vmem:[#allocation2 + $0x250] sm:$0xff]
    %v105 = vld [vmem:[#allocation2 + $0x258] sm:$0xff]
    %v106 = vld [vmem:[#allocation2 + $0x260] sm:$0xff]
    %v107 = vld [vmem:[#allocation2 + $0x268] sm:$0xff]
    %v108 = vld [vmem:[#allocation2 + $0x270] sm:$0xff]
    %v109 = vld [vmem:[#allocation2 + $0x278] sm:$0xff]
    %v110 = vld [vmem:[#allocation2 + $0x280] sm:$0xff]
    %v111 = vld [vmem:[#allocation2 + $0x288] sm:$0xff]
    %v112 = vld [vmem:[#allocation2 + $0x290] sm:$0xff]
    %v113 = vld [vmem:[#allocation2 + $0x298] sm:$0xff]
    %v114 = vld [vmem:[#allocation2 + $0x2a0] sm:$0xff]
    %v115 = vld [vmem:[#allocation2 + $0x2a8] sm:$0xff]
    %v116 = vld [vmem:[#allocation2 + $0x2b0] sm:$0xff]
    %v117 = vld [vmem:[#allocation2 + $0x2b8] sm:$0xff]
    %v118 = vld [vmem:[#allocation2 + $0x2c0] sm:$0xff]
    %v119 = vld [vmem:[#allocation2 + $0x2c8] sm:$0xff]
    %v120 = vld [vmem:[#allocation2 + $0x2d0] sm:$0xff]
    %v121 = vld [vmem:[#allocation2 + $0x2d8] sm:$0xff]
    %v122 = vld [vmem:[#allocation2 + $0x2e0] sm:$0xff]
    %v123 = vld [vmem:[#allocation2 + $0x2e8] sm:$0xff]
    %v124 = vld [vmem:[#allocation2 + $0x2f0] sm:$0xff]
    %v125 = vld [vmem:[#allocation2 + $0x2f8] sm:$0xff]
    %v126 = vld [vmem:[#allocation2 + $0x300] sm:$0xff]
    %v127 = vld [vmem:[#allocation2 + $0x308] sm:$0xff]
    %v128 = vld [vmem:[#allocation2 + $0x310] sm:$0xff]
    %v129 = vld [vmem:[#allocation2 + $0x318] sm:$0xff]
    %v130 = vld [vmem:[#allocation2 + $0x320] sm:$0xff]
    %v131 = vld [vmem:[#allocation2 + $0x328] sm:$0xff]
    %v132 = vld [vmem:[#allocation2 + $0x330] sm:$0xff]
    %v133 = vld [vmem:[#allocation2 + $0x338] sm:$0xff]
    %v134 = vld [vmem:[#allocation2 + $0x340] sm:$0x3]
    %v135 = vld [vmem:[#allocation2 + $0x348] sm:$0x3]
    %v136 = vld [vmem:[#allocation2 + $0x350] sm:$0x3]
    %v137 = vld [vmem:[#allocation2 + $0x358] sm:$0x3]
    %v138 = vpack.c.bf16 %v34, %v30
    %v139 = vpack.c.bf16 %v35, %v31
    %v140 = vpack.c.bf16 %v36, %v32
    %v141 = vpack.c.bf16 %v37, %v33
    %v142 = vpack.c.bf16 %v42, %v38
    %v143 = vpack.c.bf16 %v43, %v39
    %v144 = vpack.c.bf16 %v44, %v40
    %v145 = vpack.c.bf16 %v45, %v41
    %v146 = vpack.c.bf16 %v50, %v46
    %v147 = vpack.c.bf16 %v51, %v47
    %v148 = vpack.c.bf16 %v52, %v48
    %v149 = vpack.c.bf16 %v53, %v49
    %v150 = vpack.c.bf16 %v58, %v54
    %v151 = vpack.c.bf16 %v59, %v55
    %v152 = vpack.c.bf16 %v60, %v56
    %v153 = vpack.c.bf16 %v61, %v57
    %v154 = vpack.c.bf16 %v66, %v62
    %v155 = vpack.c.bf16 %v67, %v63
    %v156 = vpack.c.bf16 %v68, %v64
    %v157 = vpack.c.bf16 %v69, %v65
    %v158 = vpack.c.bf16 %v74, %v70
    %v159 = vpack.c.bf16 %v75, %v71
    %v160 = vpack.c.bf16 %v76, %v72
    %v161 = vpack.c.bf16 %v77, %v73
    %v162 = vpack.c.bf16 %v82, %v78
    %v163 = vpack.c.bf16 %v83, %v79
    %v164 = vpack.c.bf16 %v84, %v80
    %v165 = vpack.c.bf16 %v85, %v81
    %v166 = vpack.c.bf16 %v90, %v86
    %v167 = vpack.c.bf16 %v91, %v87
    %v168 = vpack.c.bf16 %v92, %v88
    %v169 = vpack.c.bf16 %v93, %v89
    %v170 = vpack.c.bf16 %v98, %v94
    %v171 = vpack.c.bf16 %v99, %v95
    %v172 = vpack.c.bf16 %v100, %v96
    %v173 = vpack.c.bf16 %v101, %v97
    %v174 = vpack.c.bf16 %v106, %v102
    %v175 = vpack.c.bf16 %v107, %v103
    %v176 = vpack.c.bf16 %v108, %v104
    %v177 = vpack.c.bf16 %v109, %v105
    %v178 = vpack.c.bf16 %v114, %v110
    %v179 = vpack.c.bf16 %v115, %v111
    %v180 = vpack.c.bf16 %v116, %v112
    %v181 = vpack.c.bf16 %v117, %v113
    %v182 = vpack.c.bf16 %v122, %v118
    %v183 = vpack.c.bf16 %v123, %v119
    %v184 = vpack.c.bf16 %v124, %v120
    %v185 = vpack.c.bf16 %v125, %v121
    %v186 = vpack.c.bf16 %v130, %v126
    %v187 = vpack.c.bf16 %v131, %v127
    %v188 = vpack.c.bf16 %v132, %v128
    %v189 = vpack.c.bf16 %v133, %v129
    %v190 = vpack.c.bf16 %v134, %v134
    %v191 = vpack.c.bf16 %v135, %v135
    %v192 = vpack.c.bf16 %v136, %v136
    %v193 = vpack.c.bf16 %v137, %v137
    %v194 = vld [vmem:[%s2] sm:$0xf]
    %v195 = vld [vmem:[%s2 + $0x4] sm:$0xf]
    %v196 = vld [vmem:[%s2 + $0x8] sm:$0xf]
    %v197 = vld [vmem:[%s2 + $0xc] sm:$0xf]
    %v198 = vld [vmem:[%s2 + $0x10] sm:$0xf]
    %v199 = vld [vmem:[%s2 + $0x14] sm:$0xf]
    %v200 = vld [vmem:[%s2 + $0x18] sm:$0xf]
    %v201 = vld [vmem:[%s2 + $0x1c] sm:$0xf]
    %v202 = vld [vmem:[%s2 + $0x20] sm:$0xf]
    %v203 = vld [vmem:[%s2 + $0x24] sm:$0xf]
    %v204 = vld [vmem:[%s2 + $0x28] sm:$0xf]
    %v205 = vld [vmem:[%s2 + $0x2c] sm:$0xf]
    %v206 = vld [vmem:[%s2 + $0x30] sm:$0xf]
    %v207 = vld [vmem:[%s2 + $0x34] sm:$0xf]
    %v208 = vld [vmem:[%s2 + $0x38] sm:$0xf]
    %v209 = vld [vmem:[%s2 + $0x3c] sm:$0xf]
    %v210 = vld [vmem:[%s2 + $0x40] sm:$0xf]
    %v211 = vld [vmem:[%s2 + $0x44] sm:$0xf]
    %v212 = vld [vmem:[%s2 + $0x48] sm:$0xf]
    %v213 = vld [vmem:[%s2 + $0x4c] sm:$0xf]
    %v214 = vld [vmem:[%s2 + $0x50] sm:$0xf]
    %v215 = vld [vmem:[%s2 + $0x54] sm:$0xf]
    %v216 = vld [vmem:[%s2 + $0x58] sm:$0xf]
    %v217 = vld [vmem:[%s2 + $0x5c] sm:$0xf]
    %v218 = vld [vmem:[%s2 + $0x60] sm:$0xf]
    %v219 = vld [vmem:[%s2 + $0x64] sm:$0xf]
    %v220 = vld [vmem:[%s2 + $0x68] sm:$0xf]
    %v221 = vld [vmem:[%s2 + $0x6c] sm:$0xf]
    %v222 = vld [vmem:[%s2 + $0x70] sm:$0xf]
    %v223 = vld [vmem:[%s2 + $0x74] sm:$0xf]
    %v224 = vld [vmem:[%s2 + $0x78] sm:$0xf]
    %v225 = vld [vmem:[%s2 + $0x7c] sm:$0xf]
    %v226 = vld [vmem:[%s2 + $0x80] sm:$0xf]
    %v227 = vld [vmem:[%s2 + $0x84] sm:$0xf]
    %v228 = vld [vmem:[%s2 + $0x88] sm:$0xf]
    %v229 = vld [vmem:[%s2 + $0x8c] sm:$0xf]
    %v230 = vld [vmem:[%s2 + $0x90] sm:$0xf]
    %v231 = vld [vmem:[%s2 + $0x94] sm:$0xf]
    %v232 = vld [vmem:[%s2 + $0x98] sm:$0xf]
    %v233 = vld [vmem:[%s2 + $0x9c] sm:$0xf]
    %v234 = vld [vmem:[%s2 + $0xa0] sm:$0xf]
    %v235 = vld [vmem:[%s2 + $0xa4] sm:$0xf]
    %v236 = vld [vmem:[%s2 + $0xa8] sm:$0xf]
    %v237 = vld [vmem:[%s2 + $0xac] sm:$0xf]
    %v238 = vld [vmem:[%s2 + $0xb0] sm:$0xf]
    %v239 = vld [vmem:[%s2 + $0xb4] sm:$0xf]
    %v240 = vld [vmem:[%s2 + $0xb8] sm:$0xf]
    %v241 = vld [vmem:[%s2 + $0xbc] sm:$0xf]
    %v242 = vld [vmem:[%s2 + $0xc0] sm:$0xf]
    %v243 = vld [vmem:[%s2 + $0xc4] sm:$0xf]
    %v244 = vld [vmem:[%s2 + $0xc8] sm:$0xf]
    %v245 = vld [vmem:[%s2 + $0xcc] sm:$0xf]
    %v246 = vld [vmem:[%s2 + $0xd0] sm:$0xf]
    %v247 = vld [vmem:[%s2 + $0xd4] sm:$0xf]
    %v248 = vld [vmem:[%s2 + $0xd8] sm:$0xf]
    %v249 = vld [vmem:[%s2 + $0xdc] sm:$0xf]
    %v250 = vld [vmem:[%s2 + $0xe0] sm:$0xf]
    %v251 = vld [vmem:[%s2 + $0xe4] sm:$0xf]
    %v252 = vld [vmem:[%s2 + $0xe8] sm:$0xf]
    %v253 = vld [vmem:[%s2 + $0xec] sm:$0xf]
    %v314 = vunpack.c.l.b16 %v194
    %v315 = vunpack.c.l.b16 %v195
    %v316 = vunpack.c.l.b16 %v196
    %v317 = vunpack.c.l.b16 %v197
    %v318 = vunpack.c.l.b16 %v198
    %v319 = vunpack.c.l.b16 %v199
    %v320 = vunpack.c.l.b16 %v200
    %v321 = vunpack.c.l.b16 %v201
    %v322 = vunpack.c.l.b16 %v202
    %v323 = vunpack.c.l.b16 %v203
    %v324 = vunpack.c.l.b16 %v204
    %v325 = vunpack.c.l.b16 %v205
    %v326 = vunpack.c.l.b16 %v206
    %v327 = vunpack.c.l.b16 %v207
    %v328 = vunpack.c.l.b16 %v208
    %v329 = vunpack.c.l.b16 %v209
    %v330 = vunpack.c.l.b16 %v210
    %v331 = vunpack.c.l.b16 %v211
    %v332 = vunpack.c.l.b16 %v212
    %v333 = vunpack.c.l.b16 %v213
    %v334 = vunpack.c.l.b16 %v214
    %v335 = vunpack.c.l.b16 %v215
    %v336 = vunpack.c.l.b16 %v216
    %v337 = vunpack.c.l.b16 %v217
    %v338 = vunpack.c.l.b16 %v218
    %v339 = vunpack.c.l.b16 %v219
    %v340 = vunpack.c.l.b16 %v220
    %v341 = vunpack.c.l.b16 %v221
    %v342 = vunpack.c.l.b16 %v222
    %v343 = vunpack.c.l.b16 %v223
    %v344 = vunpack.c.l.b16 %v224
    %v345 = vunpack.c.l.b16 %v225
    %v346 = vunpack.c.l.b16 %v226
    %v347 = vunpack.c.l.b16 %v227
    %v348 = vunpack.c.l.b16 %v228
    %v349 = vunpack.c.l.b16 %v229
    %v350 = vunpack.c.l.b16 %v230
    %v351 = vunpack.c.l.b16 %v231
    %v352 = vunpack.c.l.b16 %v232
    %v353 = vunpack.c.l.b16 %v233
    %v354 = vunpack.c.l.b16 %v234
    %v355 = vunpack.c.l.b16 %v235
    %v356 = vunpack.c.l.b16 %v236
    %v357 = vunpack.c.l.b16 %v237
    %v358 = vunpack.c.l.b16 %v238
    %v359 = vunpack.c.l.b16 %v239
    %v360 = vunpack.c.l.b16 %v240
    %v361 = vunpack.c.l.b16 %v241
    %v362 = vunpack.c.l.b16 %v242
    %v363 = vunpack.c.l.b16 %v243
    %v364 = vunpack.c.l.b16 %v244
    %v365 = vunpack.c.l.b16 %v245
    %v366 = vunpack.c.l.b16 %v246
    %v367 = vunpack.c.l.b16 %v247
    %v368 = vunpack.c.l.b16 %v248
    %v369 = vunpack.c.l.b16 %v249
    %v370 = vunpack.c.l.b16 %v250
    %v371 = vunpack.c.l.b16 %v251
    %v372 = vunpack.c.l.b16 %v252
    %v373 = vunpack.c.l.b16 %v253
    %v374 = vpack.c.b16 %v315, %v314
    %v375 = vpack.c.b16 %v317, %v316
    %v376 = vpack.c.b16 %v319, %v318
    %v377 = vpack.c.b16 %v321, %v320
    %v378 = vpack.c.b16 %v323, %v322
    %v379 = vpack.c.b16 %v325, %v324
    %v380 = vpack.c.b16 %v327, %v326
    %v381 = vpack.c.b16 %v329, %v328
    %v382 = vpack.c.b16 %v331, %v330
    %v383 = vpack.c.b16 %v333, %v332
    %v384 = vpack.c.b16 %v335, %v334
    %v385 = vpack.c.b16 %v337, %v336
    %v386 = vpack.c.b16 %v339, %v338
    %v387 = vpack.c.b16 %v341, %v340
    %v388 = vpack.c.b16 %v343, %v342
    %v389 = vpack.c.b16 %v345, %v344
    %v390 = vpack.c.b16 %v347, %v346
    %v391 = vpack.c.b16 %v349, %v348
    %v392 = vpack.c.b16 %v351, %v350
    %v393 = vpack.c.b16 %v353, %v352
    %v394 = vpack.c.b16 %v355, %v354
    %v395 = vpack.c.b16 %v357, %v356
    %v396 = vpack.c.b16 %v359, %v358
    %v397 = vpack.c.b16 %v361, %v360
    %v398 = vpack.c.b16 %v363, %v362
    %v399 = vpack.c.b16 %v365, %v364
    %v400 = vpack.c.b16 %v367, %v366
    %v401 = vpack.c.b16 %v369, %v368
    %v402 = vpack.c.b16 %v371, %v370
    %v403 = vpack.c.b16 %v373, %v372
    %vm434 = vcmask 785408
    %v436 = vsel %vm434, %v141, 0
    %v439 = vsel %vm434, %v145, 0
    %v442 = vsel %vm434, %v149, 0
    %v445 = vsel %vm434, %v153, 0
    %v448 = vsel %vm434, %v157, 0
    %v451 = vsel %vm434, %v161, 0
    %v454 = vsel %vm434, %v165, 0
    %v457 = vsel %vm434, %v169, 0
    %v460 = vsel %vm434, %v173, 0
    %v463 = vsel %vm434, %v177, 0
    %v466 = vsel %vm434, %v181, 0
    %v469 = vsel %vm434, %v185, 0
    %v472 = vsel %vm434, %v189, 0
    %v475 = vsel %vm434, %v193, 0
    %477 = vmatprep.subr.bf16.mxu0 0
    %478 = vmatpush1.bf16.msra.mxu0 %v374
    %479 = vmatprep.subr.bf16.mxu0 0
    %480 = vmatpush1.bf16.msra.mxu0 %v375
    %481 = vmatprep.subr.bf16.mxu0 0
    %482 = vmatpush1.bf16.msra.mxu0 %v376
    %483 = vmatprep.subr.bf16.mxu0 0
    %484 = vmatpush1.bf16.msra.mxu0 %v377
    %485 = vmatprep.subr.bf16.mxu0 0
    %486 = vmatpush1.bf16.msra.mxu0 %v378
    %487 = vmatprep.subr.bf16.mxu0 0
    %488 = vmatpush1.bf16.msra.mxu0 %v379
    %489 = vmatprep.subr.bf16.mxu0 0
    %490 = vmatpush1.bf16.msra.mxu0 %v380
    %491 = vmatprep.subr.bf16.mxu0 0
    %492 = vmatpush1.bf16.msra.mxu0 %v381
    %493 = vmatprep.subr.bf16.mxu0 0
    %494 = vmatpush1.bf16.msra.mxu0 %v382
    %495 = vmatprep.subr.bf16.mxu0 0
    %496 = vmatpush1.bf16.msra.mxu0 %v383
    %497 = vmatprep.subr.bf16.mxu0 0
    %498 = vmatpush1.bf16.msra.mxu0 %v384
    %499 = vmatprep.subr.bf16.mxu0 0
    %500 = vmatpush1.bf16.msra.mxu0 %v385
    %501 = vmatprep.subr.bf16.mxu0 0
    %502 = vmatpush1.bf16.msra.mxu0 %v386
    %503 = vmatprep.subr.bf16.mxu0 0
    %504 = vmatpush1.bf16.msra.mxu0 %v387
    %505 = vmatprep.subr.bf16.mxu0 0
    %506 = vmatpush1.bf16.msra.mxu0 %v388
    %507 = vmatprep.subr.bf16.mxu0 0
    %508 = vmatpush1.bf16.msra.mxu0 %v389
    %509 = vmatprep.mubr.bf16.mxu0 %v139
    %510 = vmatmul.mubr.bf16.gmra.mrb[0].mxu0 %v138
    %v511 = vpop.f32.mrb[0].mxu0
    %v512 = vadd.f32 0.0, %v511
    %v513 = vpop.f32.mrb[0].mxu0
    %v514 = vpop.f32.mrb[0].mxu0
    %v515 = vadd.f32 0.0, %v514
    %v516 = vpop.f32.mrb[0].mxu0
    %517 = vmatprep.mubr.bf16.mxu0 %v143
    %518 = vmatmul.mubr.bf16.gmra.mrb[0].mxu0 %v142
    %v519 = vpop.f32.mrb[0].mxu0
    %v520 = vadd.f32 0.0, %v519
    %v521 = vpop.f32.mrb[0].mxu0
    %v522 = vpop.f32.mrb[0].mxu0
    %v523 = vadd.f32 0.0, %v522
    %v524 = vpop.f32.mrb[0].mxu0
    %525 = vmatprep.mubr.bf16.mxu0 %v147
    %526 = vmatmul.mubr.bf16.gmra.mrb[0].mxu0 %v146
    %v527 = vpop.f32.mrb[0].mxu0
    %v528 = vadd.f32 0.0, %v527
    %v529 = vpop.f32.mrb[0].mxu0
    %v530 = vpop.f32.mrb[0].mxu0
    %v531 = vadd.f32 0.0, %v530
    %v532 = vpop.f32.mrb[0].mxu0
    %533 = vmatprep.mubr.bf16.mxu0 %v151
    %534 = vmatmul.mubr.bf16.gmra.mrb[0].mxu0 %v150
    %v535 = vpop.f32.mrb[0].mxu0
    %v536 = vadd.f32 0.0, %v535
    %v537 = vpop.f32.mrb[0].mxu0
    %v538 = vpop.f32.mrb[0].mxu0
    %v539 = vadd.f32 0.0, %v538
    %v540 = vpop.f32.mrb[0].mxu0
    %541 = vmatprep.mubr.bf16.mxu0 %v155
    %542 = vmatmul.mubr.bf16.gmra.mrb[0].mxu0 %v154
    %v543 = vpop.f32.mrb[0].mxu0
    %v544 = vadd.f32 0.0, %v543
    %v545 = vpop.f32.mrb[0].mxu0
    %v546 = vpop.f32.mrb[0].mxu0
    %v547 = vadd.f32 0.0, %v546
    %v548 = vpop.f32.mrb[0].mxu0
    %549 = vmatprep.mubr.bf16.mxu0 %v159
    %550 = vmatmul.mubr.bf16.gmra.mrb[0].mxu0 %v158
    %v551 = vpop.f32.mrb[0].mxu0
    %v552 = vadd.f32 0.0, %v551
    %v553 = vpop.f32.mrb[0].mxu0
    %v554 = vpop.f32.mrb[0].mxu0
    %v555 = vadd.f32 0.0, %v554
    %v556 = vpop.f32.mrb[0].mxu0
    %557 = vmatprep.mubr.bf16.mxu0 %v163
    %558 = vmatmul.mubr.bf16.gmra.mrb[0].mxu0 %v162
    %v559 = vpop.f32.mrb[0].mxu0
    %v560 = vadd.f32 0.0, %v559
    %v561 = vpop.f32.mrb[0].mxu0
    %v562 = vpop.f32.mrb[0].mxu0
    %v563 = vadd.f32 0.0, %v562
    %v564 = vpop.f32.mrb[0].mxu0
    %565 = vmatprep.mubr.bf16.mxu0 %v167
    %566 = vmatmul.mubr.bf16.gmra.mrb[0].mxu0 %v166
    %v567 = vpop.f32.mrb[0].mxu0
    %v568 = vadd.f32 0.0, %v567
    %v569 = vpop.f32.mrb[0].mxu0
    %v570 = vpop.f32.mrb[0].mxu0
    %v571 = vadd.f32 0.0, %v570
    %v572 = vpop.f32.mrb[0].mxu0
    %573 = vmatprep.mubr.bf16.mxu0 %v171
    %574 = vmatmul.mubr.bf16.gmra.mrb[0].mxu0 %v170
    %v575 = vpop.f32.mrb[0].mxu0
    %v576 = vadd.f32 0.0, %v575
    %v577 = vpop.f32.mrb[0].mxu0
    %v578 = vpop.f32.mrb[0].mxu0
    %v579 = vadd.f32 0.0, %v578
    %v580 = vpop.f32.mrb[0].mxu0
    %581 = vmatprep.mubr.bf16.mxu0 %v175
    %582 = vmatmul.mubr.bf16.gmra.mrb[0].mxu0 %v174
    %v583 = vpop.f32.mrb[0].mxu0
    %v584 = vadd.f32 0.0, %v583
    %v585 = vpop.f32.mrb[0].mxu0
    %v586 = vpop.f32.mrb[0].mxu0
    %v587 = vadd.f32 0.0, %v586
    %v588 = vpop.f32.mrb[0].mxu0
    %589 = vmatprep.mubr.bf16.mxu0 %v179
    %590 = vmatmul.mubr.bf16.gmra.mrb[0].mxu0 %v178
    %v591 = vpop.f32.mrb[0].mxu0
    %v592 = vadd.f32 0.0, %v591
    %v593 = vpop.f32.mrb[0].mxu0
    %v594 = vpop.f32.mrb[0].mxu0
    %v595 = vadd.f32 0.0, %v594
    %v596 = vpop.f32.mrb[0].mxu0
    %597 = vmatprep.mubr.bf16.mxu0 %v183
    %598 = vmatmul.mubr.bf16.gmra.mrb[0].mxu0 %v182
    %v599 = vpop.f32.mrb[0].mxu0
    %v600 = vadd.f32 0.0, %v599
    %v601 = vpop.f32.mrb[0].mxu0
    %v602 = vpop.f32.mrb[0].mxu0
    %v603 = vadd.f32 0.0, %v602
    %v604 = vpop.f32.mrb[0].mxu0
    %605 = vmatprep.mubr.bf16.mxu0 %v187
    %606 = vmatmul.mubr.bf16.gmra.mrb[0].mxu0 %v186
    %v607 = vpop.f32.mrb[0].mxu0
    %v608 = vadd.f32 0.0, %v607
    %v609 = vpop.f32.mrb[0].mxu0
    %v610 = vpop.f32.mrb[0].mxu0
    %v611 = vadd.f32 0.0, %v610
    %v612 = vpop.f32.mrb[0].mxu0
    %613 = vmatprep.mubr.bf16.mxu0 %v191
    %614 = vmatmul.mubr.bf16.gmra.mrb[0].mxu0 %v190
    %v615 = vpop.f32.mrb[0].mxu0
    %v616 = vadd.f32 0.0, %v615
    %v617 = vpop.f32.mrb[0].mxu0
    %v618 = vpop.f32.mrb[0].mxu0
    %v619 = vpop.f32.mrb[0].mxu0
    %620 = vdwg.mxu0
    %621 = vmatprep.subr.bf16.mxu0 0
    %622 = vmatpush1.bf16.msra.mxu0 %v390
    %623 = vmatprep.subr.bf16.mxu0 0
    %624 = vmatpush1.bf16.msra.mxu0 %v391
    %625 = vmatprep.subr.bf16.mxu0 0
    %626 = vmatpush1.bf16.msra.mxu0 %v392
    %627 = vmatprep.subr.bf16.mxu0 0
    %628 = vmatpush1.bf16.msra.mxu0 %v393
    %629 = vmatprep.subr.bf16.mxu0 0
    %630 = vmatpush1.bf16.msra.mxu0 %v394
    %631 = vmatprep.subr.bf16.mxu0 0
    %632 = vmatpush1.bf16.msra.mxu0 %v395
    %633 = vmatprep.subr.bf16.mxu0 0
    %634 = vmatpush1.bf16.msra.mxu0 %v396
    %635 = vmatprep.subr.bf16.mxu0 0
    %636 = vmatpush1.bf16.msra.mxu0 %v397
    %637 = vmatprep.subr.bf16.mxu0 0
    %638 = vmatpush1.bf16.msra.mxu0 %v398
    %639 = vmatprep.subr.bf16.mxu0 0
    %640 = vmatpush1.bf16.msra.mxu0 %v399
    %641 = vmatprep.subr.bf16.mxu0 0
    %642 = vmatpush1.bf16.msra.mxu0 %v400
    %643 = vmatprep.subr.bf16.mxu0 0
    %644 = vmatpush1.bf16.msra.mxu0 %v401
    %645 = vmatprep.subr.bf16.mxu0 0
    %646 = vmatpush1.bf16.msra.mxu0 %v402
    %647 = vmatprep.subr.bf16.mxu0 0
    %648 = vmatpush1.bf16.msra.mxu0 %v403
    %649 = vmatprep.subr.bf16.mxu0 0
    %650 = vmatpush1.bf16.msra.mxu0 0
    %651 = vmatprep.subr.bf16.mxu0 0
    %652 = vmatpush1.bf16.msra.mxu0 0
    %653 = vmatprep.mubr.bf16.mxu0 %v436
    %654 = vmatmul.mubr.bf16.gmra.mrb[0].mxu0 %v140
    %v655 = vpop.f32.mrb[0].mxu0
    %v656 = vadd.f32 %v512, %v655
    %v657 = vpop.f32.mrb[0].mxu0
    %v658 = vpop.f32.mrb[0].mxu0
    %v659 = vadd.f32 %v515, %v658
    %v660 = vpop.f32.mrb[0].mxu0
    %661 = vmatprep.mubr.bf16.mxu0 %v439
    %662 = vmatmul.mubr.bf16.gmra.mrb[0].mxu0 %v144
    %v663 = vpop.f32.mrb[0].mxu0
    %v664 = vadd.f32 %v520, %v663
    %v665 = vpop.f32.mrb[0].mxu0
    %v666 = vpop.f32.mrb[0].mxu0
    %v667 = vadd.f32 %v523, %v666
    %v668 = vpop.f32.mrb[0].mxu0
    %669 = vmatprep.mubr.bf16.mxu0 %v442
    %670 = vmatmul.mubr.bf16.gmra.mrb[0].mxu0 %v148
    %v671 = vpop.f32.mrb[0].mxu0
    %v672 = vadd.f32 %v528, %v671
    %v673 = vpop.f32.mrb[0].mxu0
    %v674 = vpop.f32.mrb[0].mxu0
    %v675 = vadd.f32 %v531, %v674
    %v676 = vpop.f32.mrb[0].mxu0
    %677 = vmatprep.mubr.bf16.mxu0 %v445
    %678 = vmatmul.mubr.bf16.gmra.mrb[0].mxu0 %v152
    %v679 = vpop.f32.mrb[0].mxu0
    %v680 = vadd.f32 %v536, %v679
    %v681 = vpop.f32.mrb[0].mxu0
    %v682 = vpop.f32.mrb[0].mxu0
    %v683 = vadd.f32 %v539, %v682
    %v684 = vpop.f32.mrb[0].mxu0
    %685 = vmatprep.mubr.bf16.mxu0 %v448
    %686 = vmatmul.mubr.bf16.gmra.mrb[0].mxu0 %v156
    %v687 = vpop.f32.mrb[0].mxu0
    %v688 = vadd.f32 %v544, %v687
    %v689 = vpop.f32.mrb[0].mxu0
    %v690 = vpop.f32.mrb[0].mxu0
    %v691 = vadd.f32 %v547, %v690
    %v692 = vpop.f32.mrb[0].mxu0
    %693 = vmatprep.mubr.bf16.mxu0 %v451
    %694 = vmatmul.mubr.bf16.gmra.mrb[0].mxu0 %v160
    %v695 = vpop.f32.mrb[0].mxu0
    %v696 = vadd.f32 %v552, %v695
    %v697 = vpop.f32.mrb[0].mxu0
    %v698 = vpop.f32.mrb[0].mxu0
    %v699 = vadd.f32 %v555, %v698
    %v700 = vpop.f32.mrb[0].mxu0
    %701 = vmatprep.mubr.bf16.mxu0 %v454
    %702 = vmatmul.mubr.bf16.gmra.mrb[0].mxu0 %v164
    %v703 = vpop.f32.mrb[0].mxu0
    %v704 = vadd.f32 %v560, %v703
    %v705 = vpop.f32.mrb[0].mxu0
    %v706 = vpop.f32.mrb[0].mxu0
    %v707 = vadd.f32 %v563, %v706
    %v708 = vpop.f32.mrb[0].mxu0
    %709 = vmatprep.mubr.bf16.mxu0 %v457
    %710 = vmatmul.mubr.bf16.gmra.mrb[0].mxu0 %v168
    %v711 = vpop.f32.mrb[0].mxu0
    %v712 = vadd.f32 %v568, %v711
    %v713 = vpop.f32.mrb[0].mxu0
    %v714 = vpop.f32.mrb[0].mxu0
    %v715 = vadd.f32 %v571, %v714
    %v716 = vpop.f32.mrb[0].mxu0
    %717 = vmatprep.mubr.bf16.mxu0 %v460
    %718 = vmatmul.mubr.bf16.gmra.mrb[0].mxu0 %v172
    %v719 = vpop.f32.mrb[0].mxu0
    %v720 = vadd.f32 %v576, %v719
    %v721 = vpop.f32.mrb[0].mxu0
    %v722 = vpop.f32.mrb[0].mxu0
    %v723 = vadd.f32 %v579, %v722
    %v724 = vpop.f32.mrb[0].mxu0
    %725 = vmatprep.mubr.bf16.mxu0 %v463
    %726 = vmatmul.mubr.bf16.gmra.mrb[0].mxu0 %v176
    %v727 = vpop.f32.mrb[0].mxu0
    %v728 = vadd.f32 %v584, %v727
    %v729 = vpop.f32.mrb[0].mxu0
    %v730 = vpop.f32.mrb[0].mxu0
    %v731 = vadd.f32 %v587, %v730
    %v732 = vpop.f32.mrb[0].mxu0
    %733 = vmatprep.mubr.bf16.mxu0 %v466
    %734 = vmatmul.mubr.bf16.gmra.mrb[0].mxu0 %v180
    %v735 = vpop.f32.mrb[0].mxu0
    %v736 = vadd.f32 %v592, %v735
    %v737 = vpop.f32.mrb[0].mxu0
    %v738 = vpop.f32.mrb[0].mxu0
    %v739 = vadd.f32 %v595, %v738
    %v740 = vpop.f32.mrb[0].mxu0
    %741 = vmatprep.mubr.bf16.mxu0 %v469
    %742 = vmatmul.mubr.bf16.gmra.mrb[0].mxu0 %v184
    %v743 = vpop.f32.mrb[0].mxu0
    %v744 = vadd.f32 %v600, %v743
    %v745 = vpop.f32.mrb[0].mxu0
    %v746 = vpop.f32.mrb[0].mxu0
    %v747 = vadd.f32 %v603, %v746
    %v748 = vpop.f32.mrb[0].mxu0
    %749 = vmatprep.mubr.bf16.mxu0 %v472
    %750 = vmatmul.mubr.bf16.gmra.mrb[0].mxu0 %v188
    %v751 = vpop.f32.mrb[0].mxu0
    %v752 = vadd.f32 %v608, %v751
    %v753 = vpop.f32.mrb[0].mxu0
    %v754 = vpop.f32.mrb[0].mxu0
    %v755 = vadd.f32 %v611, %v754
    %v756 = vpop.f32.mrb[0].mxu0
    %757 = vmatprep.mubr.bf16.mxu0 %v475
    %758 = vmatmul.mubr.bf16.gmra.mrb[0].mxu0 %v192
    %v759 = vpop.f32.mrb[0].mxu0
    %v760 = vadd.f32 %v616, %v759
    %v761 = vpop.f32.mrb[0].mxu0
    %v762 = vpop.f32.mrb[0].mxu0
    %v763 = vpop.f32.mrb[0].mxu0
    %764 = vdwg.mxu0
    %v765 = vld [vmem:[%s1] sm:$0xff]
    %v766 = vld [vmem:[%s1 + $0x8] sm:$0xff]
    %v767 = vld [vmem:[%s1 + $0x10] sm:$0xff]
    %v768 = vld [vmem:[%s1 + $0x18] sm:$0xff]
    %v769 = vld [vmem:[%s1 + $0x20] sm:$0xff]
    %v770 = vld [vmem:[%s1 + $0x28] sm:$0xff]
    %v771 = vld [vmem:[%s1 + $0x30] sm:$0xff]
    %v772 = vld [vmem:[%s1 + $0x38] sm:$0xff]
    %v773 = vld [vmem:[%s1 + $0x40] sm:$0xff]
    %v774 = vld [vmem:[%s1 + $0x48] sm:$0xff]
    %v775 = vld [vmem:[%s1 + $0x50] sm:$0x33]
    %v776 = vpack.c.bf16 %v659, %v656
    %v777 = vpack.c.bf16 %v667, %v664
    %v778 = vpack.c.bf16 %v675, %v672
    %v779 = vpack.c.bf16 %v683, %v680
    %v780 = vpack.c.bf16 %v691, %v688
    %v781 = vpack.c.bf16 %v699, %v696
    %v782 = vpack.c.bf16 %v707, %v704
    %v783 = vpack.c.bf16 %v715, %v712
    %v784 = vpack.c.bf16 %v723, %v720
    %v785 = vpack.c.bf16 %v731, %v728
    %v786 = vpack.c.bf16 %v739, %v736
    %v787 = vpack.c.bf16 %v747, %v744
    %v788 = vpack.c.bf16 %v755, %v752
    %v789 = vpack.c.bf16 %v760, %v760
    %v801 = vunpack.c.l.b16 %v765
    %v802 = vunpack.c.h.b16 %v765
    %v803 = vunpack.c.l.b16 %v766
    %v804 = vunpack.c.h.b16 %v766
    %v805 = vunpack.c.l.b16 %v767
    %v806 = vunpack.c.h.b16 %v767
    %v807 = vunpack.c.l.b16 %v768
    %v808 = vunpack.c.h.b16 %v768
    %v809 = vunpack.c.l.b16 %v769
    %v810 = vunpack.c.h.b16 %v769
    %v811 = vunpack.c.l.b16 %v770
    %v812 = vunpack.c.h.b16 %v770
    %v813 = vunpack.c.l.b16 %v771
    %v814 = vunpack.c.h.b16 %v771
    %v815 = vunpack.c.l.b16 %v772
    %v816 = vunpack.c.h.b16 %v772
    %v817 = vunpack.c.l.b16 %v773
    %v818 = vunpack.c.h.b16 %v773
    %v819 = vunpack.c.l.b16 %v774
    %v820 = vunpack.c.h.b16 %v774
    %v821 = vunpack.c.l.b16 %v775
    %v822 = vunpack.c.h.b16 %v775
    %v823 = vpack.c.b16 %v803, %v801
    %v824 = vpack.c.b16 %v804, %v802
    %v825 = vpack.c.b16 %v807, %v805
    %v826 = vpack.c.b16 %v808, %v806
    %v827 = vpack.c.b16 %v811, %v809
    %v828 = vpack.c.b16 %v812, %v810
    %v829 = vpack.c.b16 %v815, %v813
    %v830 = vpack.c.b16 %v816, %v814
    %v831 = vpack.c.b16 %v819, %v817
    %v832 = vpack.c.b16 %v820, %v818
    %v833 = vpack.c.b16 %v821, %v821
    %v834 = vpack.c.b16 %v822, %v822
    %vm841 = vcmask 670720
    %v843 = vsel %vm841, %v824, 0
    %v846 = vsel %vm841, %v826, 0
    %v849 = vsel %vm841, %v828, 0
    %v852 = vsel %vm841, %v830, 0
    %v855 = vsel %vm841, %v832, 0
    %v858 = vsel %vm841, %v834, 0
    %vm860 = vcmask 1040384
    %v862 = vsel %vm860, %v789, 0
    %864 = vmatprep.subr.bf16.mxu0 0
    %865 = vmatpush1.bf16.msra.mxu0 %v776
    %866 = vmatprep.subr.bf16.mxu0 0
    %867 = vmatpush1.bf16.msra.mxu0 %v777
    %868 = vmatprep.subr.bf16.mxu0 0
    %869 = vmatpush1.bf16.msra.mxu0 %v778
    %870 = vmatprep.subr.bf16.mxu0 0
    %871 = vmatpush1.bf16.msra.mxu0 %v779
    %872 = vmatprep.subr.bf16.mxu0 0
    %873 = vmatpush1.bf16.msra.mxu0 %v780
    %874 = vmatprep.subr.bf16.mxu0 0
    %875 = vmatpush1.bf16.msra.mxu0 %v781
    %876 = vmatprep.subr.bf16.mxu0 0
    %877 = vmatpush1.bf16.msra.mxu0 %v782
    %878 = vmatprep.subr.bf16.mxu0 0
    %879 = vmatpush1.bf16.msra.mxu0 %v783
    %880 = vmatprep.subr.bf16.mxu0 0
    %881 = vmatpush1.bf16.msra.mxu0 %v784
    %882 = vmatprep.subr.bf16.mxu0 0
    %883 = vmatpush1.bf16.msra.mxu0 %v785
    %884 = vmatprep.subr.bf16.mxu0 0
    %885 = vmatpush1.bf16.msra.mxu0 %v786
    %886 = vmatprep.subr.bf16.mxu0 0
    %887 = vmatpush1.bf16.msra.mxu0 %v787
    %888 = vmatprep.subr.bf16.mxu0 0
    %889 = vmatpush1.bf16.msra.mxu0 %v788
    %890 = vmatprep.subr.bf16.mxu0 0
    %891 = vmatpush1.bf16.msra.mxu0 %v862
    %892 = vmatprep.subr.bf16.mxu0 0
    %893 = vmatpush1.bf16.msra.mxu0 0
    %894 = vmatprep.subr.bf16.mxu0 0
    %895 = vmatpush1.bf16.msra.mxu0 0
    %896 = vmatprep.mubr.bf16.mxu0 %v843
    %897 = vmatmul.mubr.bf16.gmra.mrb[0].mxu0 %v823
    %v898 = vpop.f32.mrb[0].mxu0
    %v899 = vadd.f32 0.0, %v898
    %v900 = vpop.f32.mrb[0].mxu0
    %v901 = vpop.f32.mrb[0].mxu0
    %v902 = vadd.f32 0.0, %v901
    %v903 = vpop.f32.mrb[0].mxu0
    %904 = vmatprep.mubr.bf16.mxu0 %v846
    %905 = vmatmul.mubr.bf16.gmra.mrb[0].mxu0 %v825
    %v906 = vpop.f32.mrb[0].mxu0
    %v907 = vadd.f32 0.0, %v906
    %v908 = vpop.f32.mrb[0].mxu0
    %v909 = vpop.f32.mrb[0].mxu0
    %v910 = vadd.f32 0.0, %v909
    %v911 = vpop.f32.mrb[0].mxu0
    %912 = vmatprep.mubr.bf16.mxu0 %v849
    %913 = vmatmul.mubr.bf16.gmra.mrb[0].mxu0 %v827
    %v914 = vpop.f32.mrb[0].mxu0
    %v915 = vadd.f32 0.0, %v914
    %v916 = vpop.f32.mrb[0].mxu0
    %v917 = vpop.f32.mrb[0].mxu0
    %v918 = vadd.f32 0.0, %v917
    %v919 = vpop.f32.mrb[0].mxu0
    %920 = vmatprep.mubr.bf16.mxu0 %v852
    %921 = vmatmul.mubr.bf16.gmra.mrb[0].mxu0 %v829
    %v922 = vpop.f32.mrb[0].mxu0
    %v923 = vadd.f32 0.0, %v922
    %v924 = vpop.f32.mrb[0].mxu0
    %v925 = vpop.f32.mrb[0].mxu0
    %v926 = vadd.f32 0.0, %v925
    %v927 = vpop.f32.mrb[0].mxu0
    %928 = vmatprep.mubr.bf16.mxu0 %v855
    %929 = vmatmul.mubr.bf16.gmra.mrb[0].mxu0 %v831
    %v930 = vpop.f32.mrb[0].mxu0
    %v931 = vadd.f32 0.0, %v930
    %v932 = vpop.f32.mrb[0].mxu0
    %v933 = vpop.f32.mrb[0].mxu0
    %v934 = vadd.f32 0.0, %v933
    %v935 = vpop.f32.mrb[0].mxu0
    %936 = vmatprep.mubr.bf16.mxu0 %v858
    %937 = vmatmul.mubr.bf16.gmra.mrb[0].mxu0 %v833
    %v938 = vpop.f32.mrb[0].mxu0
    %v939 = vadd.f32 0.0, %v938
    %v940 = vpop.f32.mrb[0].mxu0
    %v941 = vpop.f32.mrb[0].mxu0
    %v942 = vpop.f32.mrb[0].mxu0
    %943 = vdwg.mxu0
    %vm944 = vcmask 687104
    %945 = vst.msk [vmem:[#allocation5] sm:$0xff] %vm944, %v899
    %946 = vst.msk [vmem:[#allocation5 + $0x8] sm:$0xff] %vm944, %v902
    %947 = vst.msk [vmem:[#allocation5 + $0x10] sm:$0xff] %vm944, %v907
    %948 = vst.msk [vmem:[#allocation5 + $0x18] sm:$0xff] %vm944, %v910
    %949 = vst.msk [vmem:[#allocation5 + $0x20] sm:$0xff] %vm944, %v915
    %950 = vst.msk [vmem:[#allocation5 + $0x28] sm:$0xff] %vm944, %v918
    %951 = vst.msk [vmem:[#allocation5 + $0x30] sm:$0xff] %vm944, %v923
    %952 = vst.msk [vmem:[#allocation5 + $0x38] sm:$0xff] %vm944, %v926
    %953 = vst.msk [vmem:[#allocation5 + $0x40] sm:$0xff] %vm944, %v931
    %954 = vst.msk [vmem:[#allocation5 + $0x48] sm:$0xff] %vm944, %v934
    %vm955 = vcmask 683008
    %956 = vst.msk [vmem:[#allocation5 + $0x50] sm:$0xf] %vm955, %v939
    // Predicated region
    $region18: #{tpu_custom_call.1} parent=1 // pred_check
      _
    $region19: #{tpu_custom_call.1} parent=1 // pred_check_branch
      %958 = sbr.rel (0) target = $region21
    $region20: #{tpu_custom_call.1} parent=1 // pred_region
      %s960 = ssub.s32 1408, 1408
      %961 = vsyncadd [#allocation4], %s960
      %s962 = sshll.u32 [#allocation5], 4
      %s963 = int_to_ptr.vmem [resolvable:$true] %s962
      %968 = dma.vmem_to_hbm [thread:$0]  %s963, 1408, %s3, [#allocation4], 128, 128, 8
    $region21: #{tpu_custom_call.1} parent=1 // pred_fallthru
      _
    // Predicated region
    $region22: #{tpu_custom_call.1} parent=1 // pred_check
      _
    $region23: #{tpu_custom_call.1} parent=1 // pred_check_branch
      %970 = sbr.rel (0) target = $region25
    $region24: #{tpu_custom_call.1} parent=1 // pred_region
      %971 = dma.done [#allocation4], 1408
    $region25: #{tpu_custom_call.1} parent=1 // pred_fallthru
      _
    %972 = vsyncpa [#allocation3], 1
    %973 = vsyncpa [#allocation4], 1

</llo_original>
